<compile_context>
chip_gen: v7x
topology: tpu7x:2x2x1
jax: 0.10.0
libtpu: 0.0.40
codegen_flags: <defaults>
</compile_context>

<pallas_src>
import functools

import jax
import jax.numpy as jnp
from jax import lax
from jax.experimental import pallas as pl
from jax.experimental.pallas import tpu as pltpu


def _conv_bn_relu_kernel(x_ref, w_ref, mask_ref, scale_ref, shift_ref, o_ref, *, W):
    # x_ref:     (1, Cin, HW)        one flattened NCHW image
    # w_ref:     (Cout, KH*KW*Cin)   w[co, (ky*KW+kx)*Cin + ci] = weight[co,ci,ky,kx]
    # mask_ref:  (KH*KW*Cin, HW)     0/1 halo mask (zero padding at image borders)
    # scale_ref: (Cout, 1)           gamma / sqrt(running_var + eps)
    # shift_ref: (Cout, 1)           beta + scale * (conv_bias - running_mean)
    # o_ref:     (1, Cout, HW)       lane-dense output block
    x = x_ref[0]                                   # (Cin, HW), lane-dense load
    hw = x.shape[1]

    # 9 shifted taps on the flat spatial axis (static shifts -> XLU rotates).
    taps = []
    for dy in (-1, 0, 1):
        for dx in (-1, 0, 1):
            s = dy * W + dx                        # flat-index offset of this tap
            sa = (-s) % hw                         # so tap[p] == x[p + s] (mod hw)
            taps.append(x if sa == 0 else pltpu.roll(x, sa, axis=1))

    # Single packed (KH*KW*Cin, HW) patch matrix; the mask zeroes the wrapped
    # (out-of-image) positions, i.e. the conv's zero padding — done in-kernel.
    patches = jnp.concatenate(taps, axis=0) * mask_ref[...]

    # ONE K = KH*KW*Cin MXU matmul, f32 accumulation (replaces 9 small dots).
    acc = jnp.dot(w_ref[...], patches, preferred_element_type=jnp.float32)

    # Fused conv-bias + eval-mode BatchNorm (folded) + ReLU epilogue in f32;
    # cast only at the store.  Store is lane-dense (HW lanes), no reshape.
    y = jnp.maximum(acc * scale_ref[...] + shift_ref[...], 0.0)
    o_ref[0] = y.astype(o_ref.dtype)


def conv_block_forward(x, weight, bias, gamma, beta,
                       running_mean, running_var, eps=1e-5):
    """Fused Conv2d(3x3, stride 1, pad 1, bias) + BatchNorm2d(eval) + ReLU.

    x: (N, Cin, H, W), weight: (Cout, Cin, 3, 3), bias/gamma/beta/
    running_mean/running_var: (Cout,).  Returns (N, Cout, H, W).
    """
    N, Cin, H, W = x.shape
    Cout, Cin2, KH, KW = weight.shape
    assert Cin == Cin2 and (KH, KW) == (3, 3), "kernel targets the 3x3/s1/p1 default"
    HW = H * W

    # Free (contiguous) reshape of NCHW — no transpose, no pad, no extra HBM pass.
    x_flat = x.reshape(N, Cin, HW)

    # (Cout, Cin, KH, KW) -> (Cout, KH*KW*Cin), tap-major / channel-minor,
    # matching the in-kernel patch ordering.  Keep the input dtype (no forced
    # f32 upcast; bf16 inputs feed the MXU natively on v6e/v7x).
    w_mat = jnp.transpose(weight, (0, 2, 3, 1)).reshape(Cout, KH * KW * Cin)
    w_mat = w_mat.astype(x.dtype)

    # Precomputed 0/1 halo mask: tap (dy, dx) is valid at flat p = (y, x) iff
    # 0 <= y+dy < H and 0 <= x+dx < W (implements the conv's zero padding).
    rows = jnp.arange(HW, dtype=jnp.int32) // W
    cols = jnp.arange(HW, dtype=jnp.int32) % W
    tap_masks = []
    for dy in (-1, 0, 1):
        for dx in (-1, 0, 1):
            ok = ((rows + dy >= 0) & (rows + dy < H) &
                  (cols + dx >= 0) & (cols + dx < W))
            tap_masks.append(ok)
    mask = jnp.stack(tap_masks, axis=0)[:, None, :]            # (9, 1, HW)
    mask = jnp.broadcast_to(mask, (KH * KW, Cin, HW))
    mask = mask.reshape(KH * KW * Cin, HW).astype(x.dtype)

    # Fold conv bias + eval-mode BN running stats into per-channel scale/shift.
    if bias is None:
        bias = jnp.zeros((Cout,), jnp.float32)
    inv_std = lax.rsqrt(running_var.astype(jnp.float32) + jnp.float32(eps))
    scale = gamma.astype(jnp.float32) * inv_std
    shift = beta.astype(jnp.float32) + scale * (
        bias.astype(jnp.float32) - running_mean.astype(jnp.float32))
    scale2d = scale.reshape(Cout, 1)
    shift2d = shift.reshape(Cout, 1)

    kernel = functools.partial(_conv_bn_relu_kernel, W=W)

    out_flat = pl.pallas_call(
        kernel,
        out_shape=jax.ShapeDtypeStruct((N, Cout, HW), x.dtype),
        grid_spec=pltpu.PrefetchScalarGridSpec(
            num_scalar_prefetch=0,
            grid=(N,),  # one image per step; batch shards across TCs on v7x
            in_specs=[
                pl.BlockSpec((1, Cin, HW), lambda n: (n, 0, 0)),
                pl.BlockSpec((Cout, KH * KW * Cin), lambda n: (0, 0)),
                pl.BlockSpec((KH * KW * Cin, HW), lambda n: (0, 0)),
                pl.BlockSpec((Cout, 1), lambda n: (0, 0)),
                pl.BlockSpec((Cout, 1), lambda n: (0, 0)),
            ],
            out_specs=pl.BlockSpec((1, Cout, HW), lambda n: (n, 0, 0)),
        ),
        compiler_params=pltpu.CompilerParams(
            dimension_semantics=("parallel",),
            # Explicit VMEM budget: safe on v5e/v6e (128 MiB physical) and
            # within v7x's 64 MiB; blocks here are tiny anyway.
            vmem_limit_bytes=32 * 1024 * 1024,
        ),
    )(x_flat, w_mat, mask, scale2d, shift2d)

    # Free contiguous reshape back to NCHW — no transpose pass needed.
    return out_flat.reshape(N, Cout, H, W)


def _reference(x, weight, bias, gamma, beta, mean, var, eps=1e-5):
    y = lax.conv_general_dilated(
        x, weight, window_strides=(1, 1), padding=((1, 1), (1, 1)),
        dimension_numbers=("NCHW", "OIHW", "NCHW"),
        precision=lax.Precision.HIGHEST)
    y = y + bias.reshape(1, -1, 1, 1)
    y = (y - mean.reshape(1, -1, 1, 1)) * lax.rsqrt(var.reshape(1, -1, 1, 1) + eps)
    y = y * gamma.reshape(1, -1, 1, 1) + beta.reshape(1, -1, 1, 1)
    return jnp.maximum(y, 0.0)


if __name__ == "__main__":
    # Small shapes consistent with conv_block: batch=2, in_features=4,
    # out_features=32, spatial 16x16.
    N, Cin, H, W, Cout = 2, 4, 16, 16, 32
    key = jax.random.PRNGKey(0)
    k1, k2, k3, k4, k5, k6, k7 = jax.random.split(key, 7)
    x = jax.random.normal(k1, (N, Cin, H, W), dtype=jnp.float32)
    weight = jax.random.normal(k2, (Cout, Cin, 3, 3), dtype=jnp.float32) * 0.1
    bias = jax.random.normal(k3, (Cout,), dtype=jnp.float32) * 0.1
    gamma = 1.0 + 0.1 * jax.random.normal(k4, (Cout,), dtype=jnp.float32)
    beta = 0.1 * jax.random.normal(k5, (Cout,), dtype=jnp.float32)
    running_mean = 0.1 * jax.random.normal(k6, (Cout,), dtype=jnp.float32)
    running_var = jax.random.uniform(k7, (Cout,), dtype=jnp.float32,
                                     minval=0.5, maxval=1.5)

    out = conv_block_forward(x, weight, bias, gamma, beta,
                             running_mean, running_var)
    out = jax.block_until_ready(out)

    ref = _reference(x, weight, bias, gamma, beta, running_mean, running_var)
    assert out.shape == (N, Cout, H, W)
    # Tolerance leaves headroom for MXU multi-pass f32 vs XLA conv rounding.
    assert jnp.allclose(out, ref, atol=2e-3, rtol=2e-3), (
        "mismatch vs reference, max abs err = "
        f"{float(jnp.max(jnp.abs(out - ref)))}")
    print("KERNEL_OK")
</pallas_src>

<mosaic_0001>
module attributes {stable_mosaic.version = 11 : i64} {
  func.func @_conv_bn_relu_kernel(%arg0: i32, %arg1: memref<1x4x256xf32, #tpu.memory_space<vmem>>, %arg2: memref<32x36xf32, #tpu.memory_space<vmem>>, %arg3: memref<36x256xf32, #tpu.memory_space<vmem>>, %arg4: memref<32x1xf32, #tpu.memory_space<vmem>>, %arg5: memref<32x1xf32, #tpu.memory_space<vmem>>, %arg6: memref<1x32x256xf32, #tpu.memory_space<vmem>>) attributes {dimension_semantics = [#tpu.dimension_semantics<parallel>], iteration_bounds = array<i64: 2>, scalar_prefetch = 0 : i64, scratch_operands = 0 : i64, tpu.core_type = #tpu.core_type<tc>, window_params = [{transform_indices = @transform_0, window_bounds = array<i64: 1, 4, 256>}, {pipeline_mode = #tpu.pipeline_mode<synchronous>, transform_indices = @transform_1, window_bounds = array<i64: 32, 36>}, {pipeline_mode = #tpu.pipeline_mode<synchronous>, transform_indices = @transform_2, window_bounds = array<i64: 36, 256>}, {pipeline_mode = #tpu.pipeline_mode<synchronous>, transform_indices = @transform_3, window_bounds = array<i64: 32, 1>}, {pipeline_mode = #tpu.pipeline_mode<synchronous>, transform_indices = @transform_4, window_bounds = array<i64: 32, 1>}, {transform_indices = @transform_5, window_bounds = array<i64: 1, 32, 256>}]} {
    %c0 = arith.constant 0 : index
    %c0_0 = arith.constant 0 : index
    %c0_1 = arith.constant 0 : index
    %0 = vector.load %arg1[%c0, %c0_0, %c0_1] : memref<1x4x256xf32, #tpu.memory_space<vmem>>, vector<1x4x256xf32>
    %1 = vector.shape_cast %0 : vector<1x4x256xf32> to vector<4x256xf32>
    %c17_i32 = arith.constant 17 : i32
    %2 = tpu.dynamic_rotate %1 by %c17_i32 dim 1 : vector<4x256xf32>, i32 -> vector<4x256xf32>
    %c16_i32 = arith.constant 16 : i32
    %3 = tpu.dynamic_rotate %1 by %c16_i32 dim 1 : vector<4x256xf32>, i32 -> vector<4x256xf32>
    %c15_i32 = arith.constant 15 : i32
    %4 = tpu.dynamic_rotate %1 by %c15_i32 dim 1 : vector<4x256xf32>, i32 -> vector<4x256xf32>
    %c1_i32 = arith.constant 1 : i32
    %5 = tpu.dynamic_rotate %1 by %c1_i32 dim 1 : vector<4x256xf32>, i32 -> vector<4x256xf32>
    %c255_i32 = arith.constant 255 : i32
    %6 = tpu.dynamic_rotate %1 by %c255_i32 dim 1 : vector<4x256xf32>, i32 -> vector<4x256xf32>
    %c241_i32 = arith.constant 241 : i32
    %7 = tpu.dynamic_rotate %1 by %c241_i32 dim 1 : vector<4x256xf32>, i32 -> vector<4x256xf32>
    %c240_i32 = arith.constant 240 : i32
    %8 = tpu.dynamic_rotate %1 by %c240_i32 dim 1 : vector<4x256xf32>, i32 -> vector<4x256xf32>
    %c239_i32 = arith.constant 239 : i32
    %9 = tpu.dynamic_rotate %1 by %c239_i32 dim 1 : vector<4x256xf32>, i32 -> vector<4x256xf32>
    %10 = tpu.concatenate %2, %3, %4, %5, %1, %6, %7, %8, %9 in 0 : vector<4x256xf32>, vector<4x256xf32>, vector<4x256xf32>, vector<4x256xf32>, vector<4x256xf32>, vector<4x256xf32>, vector<4x256xf32>, vector<4x256xf32>, vector<4x256xf32> -> vector<36x256xf32>
    %c0_2 = arith.constant 0 : index
    %c0_3 = arith.constant 0 : index
    %11 = vector.load %arg3[%c0_2, %c0_3] : memref<36x256xf32, #tpu.memory_space<vmem>>, vector<36x256xf32>
    %12 = arith.mulf %10, %11 : vector<36x256xf32>
    %c0_4 = arith.constant 0 : index
    %c0_5 = arith.constant 0 : index
    %13 = vector.load %arg2[%c0_4, %c0_5] : memref<32x36xf32, #tpu.memory_space<vmem>>, vector<32x36xf32>
    %cst = arith.constant dense<0.000000e+00> : vector<32x256xf32>
    %14 = tpu.matmul %13, %12, %cst {dimension_numbers = #tpu.dot_dimension_numbers<[1], [0], [0], [1], [0, 0, 1, 1], [], []>} : vector<32x36xf32>, vector<36x256xf32>, vector<32x256xf32> -> vector<32x256xf32>
    %c0_6 = arith.constant 0 : index
    %c0_7 = arith.constant 0 : index
    %15 = vector.load %arg4[%c0_6, %c0_7] : memref<32x1xf32, #tpu.memory_space<vmem>>, vector<32x1xf32>
    %16 = vector.broadcast %15 : vector<32x1xf32> to vector<32x256xf32>
    %17 = arith.mulf %14, %16 : vector<32x256xf32>
    %c0_8 = arith.constant 0 : index
    %c0_9 = arith.constant 0 : index
    %18 = vector.load %arg5[%c0_8, %c0_9] : memref<32x1xf32, #tpu.memory_space<vmem>>, vector<32x1xf32>
    %19 = vector.broadcast %18 : vector<32x1xf32> to vector<32x256xf32>
    %20 = arith.addf %17, %19 : vector<32x256xf32>
    %cst_10 = arith.constant 0.000000e+00 : f32
    %21 = vector.broadcast %cst_10 : f32 to vector<32x256xf32>
    %22 = arith.maximumf %20, %21 : vector<32x256xf32>
    %c0_11 = arith.constant 0 : index
    %c0_12 = arith.constant 0 : index
    %c0_13 = arith.constant 0 : index
    %23 = vector.load %arg6[%c0_11, %c0_12, %c0_13] : memref<1x32x256xf32, #tpu.memory_space<vmem>>, vector<1x32x256xf32>
    %24 = vector.shape_cast %23 : vector<1x32x256xf32> to vector<32x256xf32>
    %25 = vector.shape_cast %22 : vector<32x256xf32> to vector<1x32x256xf32>
    tpu.vector_store %arg6[%c0_11, %c0_12, %c0_13], %25 {strides = array<i32>} : memref<1x32x256xf32, #tpu.memory_space<vmem>>, vector<1x32x256xf32>,
    return
  }
  func.func @transform_0(%arg0: i32) -> (i32, i32, i32) {
    %c0_i32 = arith.constant 0 : i32
    %c0_i32_0 = arith.constant 0 : i32
    %c0_i32_1 = arith.constant 0 : i32
    return %arg0, %c0_i32, %c0_i32_0 : i32, i32, i32
  }
  func.func @transform_1(%arg0: i32) -> (i32, i32) {
    %c0_i32 = arith.constant 0 : i32
    %c0_i32_0 = arith.constant 0 : i32
    %c0_i32_1 = arith.constant 0 : i32
    return %c0_i32, %c0_i32_0 : i32, i32
  }
  func.func @transform_2(%arg0: i32) -> (i32, i32) {
    %c0_i32 = arith.constant 0 : i32
    %c0_i32_0 = arith.constant 0 : i32
    %c0_i32_1 = arith.constant 0 : i32
    return %c0_i32, %c0_i32_0 : i32, i32
  }
  func.func @transform_3(%arg0: i32) -> (i32, i32) {
    %c0_i32 = arith.constant 0 : i32
    %c0_i32_0 = arith.constant 0 : i32
    %c0_i32_1 = arith.constant 0 : i32
    return %c0_i32, %c0_i32_0 : i32, i32
  }
  func.func @transform_4(%arg0: i32) -> (i32, i32) {
    %c0_i32 = arith.constant 0 : i32
    %c0_i32_0 = arith.constant 0 : i32
    %c0_i32_1 = arith.constant 0 : i32
    return %c0_i32, %c0_i32_0 : i32, i32
  }
  func.func @transform_5(%arg0: i32) -> (i32, i32, i32) {
    %c0_i32 = arith.constant 0 : i32
    %c0_i32_0 = arith.constant 0 : i32
    %c0_i32_1 = arith.constant 0 : i32
    return %arg0, %c0_i32, %c0_i32_0 : i32, i32, i32
  }
}

</mosaic_0001>

<llo_original>
// kernel: tpu_custom_call.1
$region0: #{tpu_custom_call.1}
  #allocation0 [shape = 'u32[]', space=smem, size = 0x4, offset = 0x4, fixed_abs, tag = 'smem constant byte address 0x4 - core index']
  #allocation1 [shape = 'u32[144,128]{1,0:T(1,128)}', space=vmem, size = 0x12000, scoped, tag = 'internal scratch']
  %s0 = inlined_call_operand.vmem [shape: f32[2,4,256], index: 0, kind: input, shape index: {}]
  %s1 = inlined_call_operand.vmem [shape: f32[32,36], index: 1, kind: input, shape index: {}]
  %s2 = inlined_call_operand.hbm [shape: f32[36,256], index: 2, kind: input, shape index: {}]
  %s3 = inlined_call_operand.vmem [shape: f32[32,1], index: 3, kind: input, shape index: {}]
  %s4 = inlined_call_operand.vmem [shape: f32[32,1], index: 4, kind: input, shape index: {}]
  %s5 = inlined_call_operand.hbm [shape: f32[2,32,256], index: 5, kind: output, shape index: {}]
  %s6 = sld [smem:[#allocation0]]
  $region57: #{tpu_custom_call.1} parent=0
    _
  %s8 = ssub.s32 1, %s6
  %s9 = scalar_select 0, %s8, %s6
  $region1: #{tpu_custom_call.1} parent=0
    #allocation2 [shape = 'u8[40960]{0}', space=vmem, size = 0xa000, scoped, tag = 'input window, operand 2, single buffered']
    #allocation3 [shape = 's32[2]{0}', space=sflag, size = 0x8, scoped, tag = 'scoped memory for tpu_custom_call.1']
    #allocation4 [shape = 's32[2]{0}', space=sflag, size = 0x8, scoped, tag = 'scoped memory for tpu_custom_call.1']
    #allocation5 [shape = 'u8[65536]{0}', space=vmem, size = 0x10000, scoped, tag = 'output window, operand 0']
    %10 = vsyncpa [#allocation3], 0
    %11 = vsyncpa [#allocation4], 0
    %s12 = scalar_lea.sflag [#allocation4], 1
    %13 = vsyncpa %s12, 0
    loop: start=0, step=1, limit=4
    $region2: #{tpu_custom_call.1} parent=1 // loop_pre_header
      _
    $region3: #{tpu_custom_call.1} parent=1 // loop_header
      %s15 = sphi 0, %s19
      %p16 = scmp.ge.s32.totalorder %s15, 4
      %s25 = sphi 0, %s27
      %s28 = sphi 0, %s25
      %s29 = sphi 0, %s28
      %s45 = sphi 0, %s29
      %s49 = sphi 0, %s49
      %s51 = sphi 0, %s49
      %s52 = sphi 0, %s51
      %s66 = sphi 0, %s52
      %s70 = sphi 0, %s70
      %s72 = sphi 0, %s70
      %s73 = sphi 0, %s72
      %s87 = sphi 0, %s73
      %s91 = sphi 0, %s91
      %s93 = sphi 0, %s91
      %s94 = sphi 0, %s93
      %s108 = sphi 0, %s94
      %s112 = sphi 0, %s112
      %s114 = sphi 0, %s112
      %s115 = sphi 0, %s114
      %s129 = sphi 0, %s115
      %s135 = sphi 0, %s137
      %s138 = sphi 0, %s135
      %s139 = sphi 0, %s138
      %s155 = sphi 0, %s139
    $region4: #{tpu_custom_call.1} parent=1 // loop_header_branch
      %18 = sbr.rel (%p16) target = $region8
    $region5: #{tpu_custom_call.1} parent=1 // loop_body
      %s20 = ssub.s32 %s15, 1
      %s21 = ssub.s32 %s15, 2
      %s22 = sadd.s32 %s15, 1
      %s23 = ssub.s32 %s15, %s22
      %p24 = scmp.eq.s32.totalorder %s23, 0
      %s26 = sadd.s32 %s25, 1
      %s27 = scalar_select %p24, %s25, %s26
      %p30 = pneg %p24
      %p31 = scmp.eq.s32.totalorder %s15, 1
      %p32 = por %p30, %p31
      %p33 = scmp.ne.s32.totalorder %s25, %s28
      %p34 = scmp.eq.s32.totalorder %s15, 0
      %p35 = por %p33, %p34
      %p36 = scmp.ne.s32.totalorder %s25, %s28
      %p37 = scmp.eq.s32.totalorder %s20, 1
      %p38 = por %p36, %p37
      %p39 = scmp.ne.s32.totalorder %s28, %s29
      %p40 = scmp.eq.s32.totalorder %s20, 0
      %p41 = por %p39, %p40
      %p42 = scmp.ne.s32.totalorder %s28, %s29
      %p43 = scmp.eq.s32.totalorder %s21, 1
      %p44 = por %p42, %p43
      %p46 = scmp.ne.s32.totalorder %s29, %s45
      %p47 = scmp.eq.s32.totalorder %s21, 0
      %p48 = por %p46, %p47
      %s50 = sadd.s32 %s49, 1
      %p53 = scmp.eq.s32.totalorder %s15, 1
      %p54 = scmp.ne.s32.totalorder %s49, %s51
      %p55 = scmp.eq.s32.totalorder %s15, 0
      %p56 = por %p54, %p55
      %p57 = scmp.ne.s32.totalorder %s49, %s51
      %p58 = scmp.eq.s32.totalorder %s20, 1
      %p59 = por %p57, %p58
      %p60 = scmp.ne.s32.totalorder %s51, %s52
      %p61 = scmp.eq.s32.totalorder %s20, 0
      %p62 = por %p60, %p61
      %p63 = scmp.ne.s32.totalorder %s51, %s52
      %p64 = scmp.eq.s32.totalorder %s21, 1
      %p65 = por %p63, %p64
      %p67 = scmp.ne.s32.totalorder %s52, %s66
      %p68 = scmp.eq.s32.totalorder %s21, 0
      %p69 = por %p67, %p68
      %s71 = sadd.s32 %s70, 1
      %p74 = scmp.eq.s32.totalorder %s15, 1
      %p75 = scmp.ne.s32.totalorder %s70, %s72
      %p76 = scmp.eq.s32.totalorder %s15, 0
      %p77 = por %p75, %p76
      %p78 = scmp.ne.s32.totalorder %s70, %s72
      %p79 = scmp.eq.s32.totalorder %s20, 1
      %p80 = por %p78, %p79
      %p81 = scmp.ne.s32.totalorder %s72, %s73
      %p82 = scmp.eq.s32.totalorder %s20, 0
      %p83 = por %p81, %p82
      %p84 = scmp.ne.s32.totalorder %s72, %s73
      %p85 = scmp.eq.s32.totalorder %s21, 1
      %p86 = por %p84, %p85
      %p88 = scmp.ne.s32.totalorder %s73, %s87
      %p89 = scmp.eq.s32.totalorder %s21, 0
      %p90 = por %p88, %p89
      %s92 = sadd.s32 %s91, 1
      %p95 = scmp.eq.s32.totalorder %s15, 1
      %p96 = scmp.ne.s32.totalorder %s91, %s93
      %p97 = scmp.eq.s32.totalorder %s15, 0
      %p98 = por %p96, %p97
      %p99 = scmp.ne.s32.totalorder %s91, %s93
      %p100 = scmp.eq.s32.totalorder %s20, 1
      %p101 = por %p99, %p100
      %p102 = scmp.ne.s32.totalorder %s93, %s94
      %p103 = scmp.eq.s32.totalorder %s20, 0
      %p104 = por %p102, %p103
      %p105 = scmp.ne.s32.totalorder %s93, %s94
      %p106 = scmp.eq.s32.totalorder %s21, 1
      %p107 = por %p105, %p106
      %p109 = scmp.ne.s32.totalorder %s94, %s108
      %p110 = scmp.eq.s32.totalorder %s21, 0
      %p111 = por %p109, %p110
      %s113 = sadd.s32 %s112, 1
      %p116 = scmp.eq.s32.totalorder %s15, 1
      %p117 = scmp.ne.s32.totalorder %s112, %s114
      %p118 = scmp.eq.s32.totalorder %s15, 0
      %p119 = por %p117, %p118
      %p120 = scmp.ne.s32.totalorder %s112, %s114
      %p121 = scmp.eq.s32.totalorder %s20, 1
      %p122 = por %p120, %p121
      %p123 = scmp.ne.s32.totalorder %s114, %s115
      %p124 = scmp.eq.s32.totalorder %s20, 0
      %p125 = por %p123, %p124
      %p126 = scmp.ne.s32.totalorder %s114, %s115
      %p127 = scmp.eq.s32.totalorder %s21, 1
      %p128 = por %p126, %p127
      %p130 = scmp.ne.s32.totalorder %s115, %s129
      %p131 = scmp.eq.s32.totalorder %s21, 0
      %p132 = por %p130, %p131
      %s133 = ssub.s32 %s15, %s22
      %p134 = scmp.eq.s32.totalorder %s133, 0
      %s136 = sadd.s32 %s135, 1
      %s137 = scalar_select %p134, %s135, %s136
      %p140 = pneg %p134
      %p141 = scmp.eq.s32.totalorder %s15, 1
      %p142 = por %p140, %p141
      %p143 = scmp.ne.s32.totalorder %s135, %s138
      %p144 = scmp.eq.s32.totalorder %s15, 0
      %p145 = por %p143, %p144
      %p146 = scmp.ne.s32.totalorder %s135, %s138
      %p147 = scmp.eq.s32.totalorder %s20, 1
      %p148 = por %p146, %p147
      %p149 = scmp.ne.s32.totalorder %s138, %s139
      %p150 = scmp.eq.s32.totalorder %s20, 0
      %p151 = por %p149, %p150
      %p152 = scmp.ne.s32.totalorder %s138, %s139
      %p153 = scmp.eq.s32.totalorder %s21, 1
      %p154 = por %p152, %p153
      %p156 = scmp.ne.s32.totalorder %s139, %s155
      %p157 = scmp.eq.s32.totalorder %s21, 0
      %p158 = por %p156, %p157
      %p159 = scmp.le.s32.totalorder 1, %s15
      %p160 = scmp.lt.s32.totalorder %s15, 3
      %p161 = pnand %p159, %p160
      %p162 = pneg %p161
      // Predicated region
      $region9: #{tpu_custom_call.1} parent=5 // pred_check
        _
      $region10: #{tpu_custom_call.1} parent=5 // pred_check_branch
        %164 = sbr.rel (%p161) target = $region12
      $region11: #{tpu_custom_call.1} parent=5 // pred_region
        %s165 = ssub.s32 %s15, 1
        // Predicated region
        $region13: #{tpu_custom_call.1} parent=11 // pred_check
          %p166 = pneg %p62
        $region14: #{tpu_custom_call.1} parent=11 // pred_check_branch
          %168 = sbr.rel (%p166) target = $region16
        $region15: #{tpu_custom_call.1} parent=11 // pred_region
          _
        $region16: #{tpu_custom_call.1} parent=11 // pred_fallthru
          _
        // Predicated region
        $region17: #{tpu_custom_call.1} parent=11 // pred_check
          %p169 = pneg %p83
        $region18: #{tpu_custom_call.1} parent=11 // pred_check_branch
          %171 = sbr.rel (%p169) target = $region20
        $region19: #{tpu_custom_call.1} parent=11 // pred_region
          %s173 = ssub.s32 1280, 1280
          %174 = vsyncadd [#allocation3], %s173
          %s175 = sshll.u32 [#allocation2], 4
          %s176 = int_to_ptr.vmem [resolvable:$true] %s175
          %181 = dma.hbm_to_vmem [thread:$0]  %s2, 1280, %s176, [#allocation3], 256, 256, 16
        $region20: #{tpu_custom_call.1} parent=11 // pred_fallthru
          _
        // Predicated region
        $region21: #{tpu_custom_call.1} parent=11 // pred_check
          %p182 = pneg %p104
        $region22: #{tpu_custom_call.1} parent=11 // pred_check_branch
          %184 = sbr.rel (%p182) target = $region24
        $region23: #{tpu_custom_call.1} parent=11 // pred_region
          _
        $region24: #{tpu_custom_call.1} parent=11 // pred_fallthru
          _
        // Predicated region
        $region25: #{tpu_custom_call.1} parent=11 // pred_check
          %p185 = pneg %p125
        $region26: #{tpu_custom_call.1} parent=11 // pred_check_branch
          %187 = sbr.rel (%p185) target = $region28
        $region27: #{tpu_custom_call.1} parent=11 // pred_region
          _
        $region28: #{tpu_custom_call.1} parent=11 // pred_fallthru
          _
      $region12: #{tpu_custom_call.1} parent=5 // pred_fallthru
        _
      %p188 = scmp.lt.s32.totalorder %s15, 2
      // Predicated region
      $region29: #{tpu_custom_call.1} parent=5 // pred_check
        %p189 = pneg %p188
      $region30: #{tpu_custom_call.1} parent=5 // pred_check_branch
        %191 = sbr.rel (%p189) target = $region32
      $region31: #{tpu_custom_call.1} parent=5 // pred_region
        // Predicated region
        $region33: #{tpu_custom_call.1} parent=31 // pred_check
          %p192 = pneg %p35
        $region34: #{tpu_custom_call.1} parent=31 // pred_check_branch
          %194 = sbr.rel (%p192) target = $region36
        $region35: #{tpu_custom_call.1} parent=31 // pred_region
          %p195 = scmp.lt.s32.totalorder %s15, 1
          %s196 = scalar_select %p195, %s15, 1
          %s197 = smul.addr %s196, 2
          %s198 = smul.addr %s197, 4
          %s199 = scalar_lea.vmem %s0, %s198
        $region36: #{tpu_custom_call.1} parent=31 // pred_fallthru
          _
      $region32: #{tpu_custom_call.1} parent=5 // pred_fallthru
        _
      %p200 = scmp.le.s32.totalorder 1, %s15
      %p201 = scmp.lt.s32.totalorder %s15, 3
      %p202 = pnand %p200, %p201
      %p203 = pneg %p202
      // Predicated region
      $region37: #{tpu_custom_call.1} parent=5 // pred_check
        _
      $region38: #{tpu_custom_call.1} parent=5 // pred_check_branch
        %205 = sbr.rel (%p202) target = $region40
      $region39: #{tpu_custom_call.1} parent=5 // pred_region
        %s206 = ssub.s32 %s15, 1
        // Predicated region
        $region41: #{tpu_custom_call.1} parent=39 // pred_check
          %p207 = pneg %p83
        $region42: #{tpu_custom_call.1} parent=39 // pred_check_branch
          %209 = sbr.rel (%p207) target = $region44
        $region43: #{tpu_custom_call.1} parent=39 // pred_region
          %210 = dma.done [#allocation3], 1280
        $region44: #{tpu_custom_call.1} parent=39 // pred_fallthru
          _
        %p211 = scmp.lt.s32.totalorder %s20, 1
        %s212 = scalar_select %p211, %s20, 1
        %s213 = smul.addr %s212, 2
        %s214 = smul.addr %s213, 4
        %s215 = scalar_lea.vmem %s0, %s214
        %p216 = pneg %p41
        %p217 = pneg %p38
        %p218 = pneg %p62
        %p219 = pneg %p59
        %p220 = pneg %p83
        %p221 = pneg %p80
        %p222 = pneg %p104
        %p223 = pneg %p101
        %p224 = pneg %p125
        %p225 = pneg %p122
        %p226 = pneg %p151
        %p227 = pneg %p148
        %s228 = sand.u32 %s138, 1
        %s229 = scalar_lea.sflag [#allocation4], %s228
        %s230 = sand.u32 %s138, 1
        %s231 = smul.addr %s230, 64
        %s232 = scalar_lea.vmem [#allocation5], %s231
        %p233 = scmp.lt.s32.totalorder %s20, 1
        %s234 = scalar_select %p233, %s20, 1
        %s235 = smul.addr %s234, 2
        %s236 = smul.addr %s235, 4
        %s237 = scalar_lea.vmem %s0, %s236
        %v238 = vld [vmem:[%s237] sm:$0xff]
        %v240 = vcombine.high %v238, %v238
        %242 = vrot.lane.b32.xlu0 %v238, 17
        %v243 = vpop.permute.xlu0 %242
        %244 = vrot.lane.b32.xlu0 %v240, 17
        %v245 = vpop.permute.xlu0 %244
        %v246 = vlaneseq
        %v247 = vand.u32 %v246, 127
        %vm248 = vcmp.lt.s32.totalorder %v247, 17
        %v249 = vsel %vm248, %v243, %v245
        %v250 = vsel %vm248, %v245, %v243
        %251 = vrot.lane.b32.xlu0 %v238, 16
        %v252 = vpop.permute.xlu0 %251
        %253 = vrot.lane.b32.xlu0 %v240, 16
        %v254 = vpop.permute.xlu0 %253
        %vm255 = vcmp.lt.s32.totalorder %v247, 16
        %v256 = vsel %vm255, %v252, %v254
        %v257 = vsel %vm255, %v254, %v252
        %258 = vrot.lane.b32.xlu0 %v238, 15
        %v259 = vpop.permute.xlu0 %258
        %260 = vrot.lane.b32.xlu0 %v240, 15
        %v261 = vpop.permute.xlu0 %260
        %vm262 = vcmp.lt.s32.totalorder %v247, 15
        %v263 = vsel %vm262, %v259, %v261
        %v264 = vsel %vm262, %v261, %v259
        %265 = vrot.lane.b32.xlu0 %v238, 1
        %v266 = vpop.permute.xlu0 %265
        %267 = vrot.lane.b32.xlu0 %v240, 1
        %v268 = vpop.permute.xlu0 %267
        %vm269 = vcmp.lt.s32.totalorder %v247, 1
        %v270 = vsel %vm269, %v266, %v268
        %v271 = vsel %vm269, %v268, %v266
        %272 = vrot.lane.b32.xlu0 %v238, 127
        %v273 = vpop.permute.xlu0 %272
        %274 = vrot.lane.b32.xlu0 %v240, 127
        %v275 = vpop.permute.xlu0 %274
        %vm276 = vcmp.lt.s32.totalorder %v247, 127
        %v277 = vsel %vm276, %v273, %v275
        %v278 = vsel %vm276, %v275, %v273
        %279 = vrot.lane.b32.xlu0 %v238, 113
        %v280 = vpop.permute.xlu0 %279
        %281 = vrot.lane.b32.xlu0 %v240, 113
        %v282 = vpop.permute.xlu0 %281
        %vm283 = vcmp.lt.s32.totalorder %v247, 113
        %v284 = vsel %vm283, %v280, %v282
        %v285 = vsel %vm283, %v282, %v280
        %286 = vrot.lane.b32.xlu0 %v238, 112
        %v287 = vpop.permute.xlu0 %286
        %288 = vrot.lane.b32.xlu0 %v240, 112
        %v289 = vpop.permute.xlu0 %288
        %vm290 = vcmp.lt.s32.totalorder %v247, 112
        %v291 = vsel %vm290, %v287, %v289
        %v292 = vsel %vm290, %v289, %v287
        %293 = vrot.lane.b32.xlu0 %v238, 111
        %v294 = vpop.permute.xlu0 %293
        %295 = vrot.lane.b32.xlu0 %v240, 111
        %v296 = vpop.permute.xlu0 %295
        %vm297 = vcmp.lt.s32.totalorder %v247, 111
        %v298 = vsel %vm297, %v294, %v296
        %v299 = vsel %vm297, %v296, %v294
        %v302 = vrot.slane %v257, 4
        %v303 = vrot.slane %v256, 4
        %v308 = vrot.slane %v271, 4
        %v309 = vrot.slane %v270, 4
        %v314 = vrot.slane %v277, 4
        %v315 = vrot.slane %v278, 4
        %v320 = vrot.slane %v291, 4
        %v321 = vrot.slane %v292, 4
        %vm324 = vcmask 1043456
        %v325 = vsel %vm324, %v250, %v302
        %v326 = vsel %vm324, %v249, %v303
        %v327 = vsel %vm324, %v264, %v308
        %v328 = vsel %vm324, %v263, %v309
        %v329 = vsel %vm324, %v238, %v314
        %v330 = vsel %vm324, %v240, %v315
        %v331 = vsel %vm324, %v284, %v320
        %v332 = vsel %vm324, %v285, %v321
        %v333 = vld [vmem:[#allocation2] sm:$0xff]
        %v334 = vld [vmem:[#allocation2 + $0x8] sm:$0xff]
        %v335 = vld [vmem:[#allocation2 + $0x10] sm:$0xff]
        %v336 = vld [vmem:[#allocation2 + $0x18] sm:$0xff]
        %v337 = vld [vmem:[#allocation2 + $0x20] sm:$0xff]
        %v338 = vld [vmem:[#allocation2 + $0x28] sm:$0xff]
        %v339 = vld [vmem:[#allocation2 + $0x30] sm:$0xff]
        %v340 = vld [vmem:[#allocation2 + $0x38] sm:$0xff]
        %v341 = vld [vmem:[#allocation2 + $0x40] sm:$0xf]
        %v342 = vld [vmem:[#allocation2 + $0x48] sm:$0xf]
        %v343 = vmul.f32 %v325, %v333
        %v344 = vmul.f32 %v326, %v334
        %v345 = vmul.f32 %v327, %v335
        %v346 = vmul.f32 %v328, %v336
        %v347 = vmul.f32 %v329, %v337
        %v348 = vmul.f32 %v330, %v338
        %v349 = vmul.f32 %v331, %v339
        %v350 = vmul.f32 %v332, %v340
        %v351 = vmul.f32 %v298, %v341
        %v352 = vmul.f32 %v299, %v342
        %v353 = vld [vmem:[%s1] sm:$0xff]
        %v354 = vld [vmem:[%s1 + $0x8] sm:$0xff]
        %v355 = vld [vmem:[%s1 + $0x10] sm:$0xff]
        %v356 = vld [vmem:[%s1 + $0x18] sm:$0xff]
        %vm357 = vcmask 293888
        %v359 = vsel %vm357, %v353, 0
        %v362 = vsel %vm357, %v354, 0
        %v365 = vsel %vm357, %v355, 0
        %v368 = vsel %vm357, %v356, 0
        %v371 = vsel %vm324, %v351, 0
        %v374 = vsel %vm324, %v352, 0
        %376 = vmatprep.subr.mxu0 %v344
        %377 = vmatpush1.msra.mxu0 %v343
        %378 = vmatprep.subr.mxu0 %v346
        %379 = vmatpush1.msra.mxu0 %v345
        %380 = vmatprep.subr.mxu0 %v348
        %381 = vmatpush1.msra.mxu0 %v347
        %382 = vmatprep.subr.mxu0 %v350
        %383 = vmatpush1.msra.mxu0 %v349
        %384 = vmatprep.subr.mxu0 %v374
        %385 = vmatpush1.msra.mxu0 %v371
        %386 = vmatprep.subr.mxu0 0.0
        %387 = vmatpush1.msra.mxu0 0.0
        %388 = vmatprep.subr.mxu0 0.0
        %389 = vmatpush1.msra.mxu0 0.0
        %390 = vmatprep.subr.mxu0 0.0
        %391 = vmatpush1.msra.mxu0 0.0
        %392 = vmatprep.subr.mxu0 0.0
        %393 = vmatpush1.msra.mxu0 0.0
        %394 = vmatprep.subr.mxu0 0.0
        %395 = vmatpush1.msra.mxu0 0.0
        %396 = vmatprep.subr.mxu0 0.0
        %397 = vmatpush1.msra.mxu0 0.0
        %398 = vmatprep.subr.mxu0 0.0
        %399 = vmatpush1.msra.mxu0 0.0
        %400 = vmatprep.subr.mxu0 0.0
        %401 = vmatpush1.msra.mxu0 0.0
        %402 = vmatprep.subr.mxu0 0.0
        %403 = vmatpush1.msra.mxu0 0.0
        %404 = vmatprep.subr.mxu0 0.0
        %405 = vmatpush1.msra.mxu0 0.0
        %406 = vmatprep.subr.mxu0 0.0
        %407 = vmatpush1.msra.mxu0 0.0
        %408 = vmatprep.subr.mxu0 0.0
        %409 = vmatpush1.msra.mxu0 0.0
        %410 = vmatprep.subr.mxu0 0.0
        %411 = vmatpush1.msra.mxu0 0.0
        %412 = vmatprep.subr.mxu0 0.0
        %413 = vmatpush1.msra.mxu0 0.0
        %414 = vmatprep.subr.mxu0 0.0
        %415 = vmatpush1.msra.mxu0 0.0
        %416 = vmatprep.subr.mxu0 0.0
        %417 = vmatpush1.msra.mxu0 0.0
        %418 = vmatprep.subr.mxu0 0.0
        %419 = vmatpush1.msra.mxu0 0.0
        %420 = vmatprep.subr.mxu0 0.0
        %421 = vmatpush1.msra.mxu0 0.0
        %422 = vmatprep.subr.mxu0 0.0
        %423 = vmatpush1.msra.mxu0 0.0
        %424 = vmatprep.subr.mxu0 0.0
        %425 = vmatpush1.msra.mxu0 0.0
        %426 = vmatprep.subr.mxu0 0.0
        %427 = vmatpush1.msra.mxu0 0.0
        %428 = vmatprep.subr.mxu0 0.0
        %429 = vmatpush1.msra.mxu0 0.0
        %430 = vmatprep.subr.mxu0 0.0
        %431 = vmatpush1.msra.mxu0 0.0
        %432 = vmatprep.subr.mxu0 0.0
        %433 = vmatpush1.msra.mxu0 0.0
        %434 = vmatprep.subr.mxu0 0.0
        %435 = vmatpush1.msra.mxu0 0.0
        %436 = vmatprep.subr.mxu0 0.0
        %437 = vmatpush1.msra.mxu0 0.0
        %438 = vmatprep.subr.mxu0 0.0
        %439 = vmatpush1.msra.mxu0 0.0
        %440 = vmatprep.mubr.f32.mxu0 0.0
        %441 = vmatmul.mubr.f32.gmra.mrb[0].mxu0 %v359
        %v442 = vpop.f32.mrb[0].mxu0
        %v443 = vadd.f32 0.0, %v442
        %v444 = vpop.f32.mrb[0].mxu0
        %v445 = vadd.f32 0.0, %v444
        %446 = vmatprep.mubr.f32.mxu0 0.0
        %447 = vmatmul.mubr.f32.gmra.mrb[0].mxu0 %v362
        %v448 = vpop.f32.mrb[0].mxu0
        %v449 = vadd.f32 0.0, %v448
        %v450 = vpop.f32.mrb[0].mxu0
        %v451 = vadd.f32 0.0, %v450
        %452 = vmatprep.mubr.f32.mxu0 0.0
        %453 = vmatmul.mubr.f32.gmra.mrb[0].mxu0 %v365
        %v454 = vpop.f32.mrb[0].mxu0
        %v455 = vadd.f32 0.0, %v454
        %v456 = vpop.f32.mrb[0].mxu0
        %v457 = vadd.f32 0.0, %v456
        %458 = vmatprep.mubr.f32.mxu0 0.0
        %459 = vmatmul.mubr.f32.gmra.mrb[0].mxu0 %v368
        %v460 = vpop.f32.mrb[0].mxu0
        %v461 = vadd.f32 0.0, %v460
        %v462 = vpop.f32.mrb[0].mxu0
        %v463 = vadd.f32 0.0, %v462
        %464 = vdwg.mxu0
        %v465 = vld [vmem:[%s3] sm:$0xff]
        %v466 = vld [vmem:[%s3 + $0x8] sm:$0xff]
        %v467 = vld [vmem:[%s3 + $0x10] sm:$0xff]
        %v468 = vld [vmem:[%s3 + $0x18] sm:$0xff]
        %470 = vset.pattern.permute.xlu0 0
        %471 = vperm.xlu0 %470, %v465
        %v472 = vpop.permute.xlu0 %471
        %475 = vset.pattern.permute.xlu0 0
        %476 = vperm.xlu0 %475, %v466
        %v477 = vpop.permute.xlu0 %476
        %480 = vset.pattern.permute.xlu0 0
        %481 = vperm.xlu0 %480, %v467
        %v482 = vpop.permute.xlu0 %481
        %485 = vset.pattern.permute.xlu0 0
        %486 = vperm.xlu0 %485, %v468
        %v487 = vpop.permute.xlu0 %486
        %v489 = vmul.f32 %v443, %v472
        %v490 = vmul.f32 %v445, %v472
        %v491 = vmul.f32 %v449, %v477
        %v492 = vmul.f32 %v451, %v477
        %v493 = vmul.f32 %v455, %v482
        %v494 = vmul.f32 %v457, %v482
        %v495 = vmul.f32 %v461, %v487
        %v496 = vmul.f32 %v463, %v487
        %v497 = vld [vmem:[%s4] sm:$0xff]
        %v498 = vld [vmem:[%s4 + $0x8] sm:$0xff]
        %v499 = vld [vmem:[%s4 + $0x10] sm:$0xff]
        %v500 = vld [vmem:[%s4 + $0x18] sm:$0xff]
        %502 = vset.pattern.permute.xlu0 0
        %503 = vperm.xlu0 %502, %v497
        %v504 = vpop.permute.xlu0 %503
        %507 = vset.pattern.permute.xlu0 0
        %508 = vperm.xlu0 %507, %v498
        %v509 = vpop.permute.xlu0 %508
        %512 = vset.pattern.permute.xlu0 0
        %513 = vperm.xlu0 %512, %v499
        %v514 = vpop.permute.xlu0 %513
        %517 = vset.pattern.permute.xlu0 0
        %518 = vperm.xlu0 %517, %v500
        %v519 = vpop.permute.xlu0 %518
        %v521 = vadd.f32 %v489, %v504
        %v522 = vadd.f32 %v490, %v504
        %v523 = vadd.f32 %v491, %v509
        %v524 = vadd.f32 %v492, %v509
        %v525 = vadd.f32 %v493, %v514
        %v526 = vadd.f32 %v494, %v514
        %v527 = vadd.f32 %v495, %v519
        %v528 = vadd.f32 %v496, %v519
        %v529 = vmax.f32 %v521, 0.0
        %v530 = vmax.f32 %v522, 0.0
        %v531 = vmax.f32 %v523, 0.0
        %v532 = vmax.f32 %v524, 0.0
        %v533 = vmax.f32 %v525, 0.0
        %v534 = vmax.f32 %v526, 0.0
        %v535 = vmax.f32 %v527, 0.0
        %v536 = vmax.f32 %v528, 0.0
        %537 = vst [vmem:[%s232] sm:$0xff] %v529
        %538 = vst [vmem:[%s232 + $0x8] sm:$0xff] %v530
        %539 = vst [vmem:[%s232 + $0x10] sm:$0xff] %v531
        %540 = vst [vmem:[%s232 + $0x18] sm:$0xff] %v532
        %541 = vst [vmem:[%s232 + $0x20] sm:$0xff] %v533
        %542 = vst [vmem:[%s232 + $0x28] sm:$0xff] %v534
        %543 = vst [vmem:[%s232 + $0x30] sm:$0xff] %v535
        %544 = vst [vmem:[%s232 + $0x38] sm:$0xff] %v536
        %s545 = sand.u32 %s138, 1
        %s546 = scalar_lea.sflag [#allocation4], %s545
        %s547 = sand.u32 %s138, 1
        %s548 = smul.addr %s547, 64
        %s549 = scalar_lea.vmem [#allocation5], %s548
        // Predicated region
        $region45: #{tpu_custom_call.1} parent=39 // pred_check
          %p550 = pneg %p148
        $region46: #{tpu_custom_call.1} parent=39 // pred_check_branch
          %552 = sbr.rel (%p550) target = $region48
        $region47: #{tpu_custom_call.1} parent=39 // pred_region
          %s554 = ssub.s32 1024, 1024
          %555 = vsyncadd %s546, %s554
          %s556 = smul.addr %s20, 8
          %s557 = smul.addr %s556, 128
          %s558 = scalar_lea.hbm %s5, %s557
          %s559 = sshll.u32 %s549, 4
          %s560 = int_to_ptr.vmem [resolvable:$true] %s559
          %565 = dma.vmem_to_hbm [thread:$0]  %s560, 1024, %s558, %s546, 256, 256, 16
        $region48: #{tpu_custom_call.1} parent=39 // pred_fallthru
          _
      $region40: #{tpu_custom_call.1} parent=5 // pred_fallthru
        _
      %p566 = scmp.le.s32.totalorder 2, %s15
      // Predicated region
      $region49: #{tpu_custom_call.1} parent=5 // pred_check
        %p567 = pneg %p566
      $region50: #{tpu_custom_call.1} parent=5 // pred_check_branch
        %569 = sbr.rel (%p567) target = $region52
      $region51: #{tpu_custom_call.1} parent=5 // pred_region
        %s570 = ssub.s32 %s15, 2
        // Predicated region
        $region53: #{tpu_custom_call.1} parent=51 // pred_check
          %p571 = pneg %p154
        $region54: #{tpu_custom_call.1} parent=51 // pred_check_branch
          %573 = sbr.rel (%p571) target = $region56
        $region55: #{tpu_custom_call.1} parent=51 // pred_region
          %s574 = sand.u32 %s139, 1
          %s575 = scalar_lea.sflag [#allocation4], %s574
          %s576 = sand.u32 %s139, 1
          %s577 = smul.addr %s576, 64
          %s578 = scalar_lea.vmem [#allocation5], %s577
          %579 = dma.done %s575, 1024
        $region56: #{tpu_custom_call.1} parent=51 // pred_fallthru
          _
      $region52: #{tpu_custom_call.1} parent=5 // pred_fallthru
        _
    $region6: #{tpu_custom_call.1} parent=1 // loop_footer
      %s19 = sadd.s32 1, %s15
    $region7: #{tpu_custom_call.1} parent=1 // loop_footer_branch
      %14 = sbr.rel target = $region3
    $region8: #{tpu_custom_call.1} parent=1 // loop_exit
      _
    %580 = vsyncpa [#allocation3], 1
    %s581 = scalar_lea.sflag [#allocation3], 1
    %582 = vsyncpa %s581, 1
    %583 = vsyncpa [#allocation4], 1
    %s584 = scalar_lea.sflag [#allocation4], 1
    %585 = vsyncpa %s584, 1

</llo_original>
